<compile_context>
chip_gen: v7x
topology: tpu7x:2x2x1
jax: 0.10.0
libtpu: 0.0.40
codegen_flags: <defaults>
</compile_context>

<pallas_src>
import functools

import jax
import jax.numpy as jnp
from jax import lax
from jax.experimental import pallas as pl
from jax.experimental.pallas import tpu as pltpu


def _round_up(x: int, m: int) -> int:
    return (x + m - 1) // m * m


def _tile_scores(src_ref, tgt_ref):
    """exp(-pairwise_distance) for one (tm, N_pad) tile, bf16 MXU, f32 acc."""
    xy = lax.dot_general(
        src_ref[...], tgt_ref[...],
        dimension_numbers=(((1,), (1,)), ((), ())),   # contract channel dims
        preferred_element_type=jnp.float32,
    )                                                  # (tm, N_pad) f32
    dist = jnp.maximum(2.0 - 2.0 * xy, 0.0)
    return jnp.exp(-dist)


def _colsum_kernel(src_ref, tgt_ref, svalid_ref, colsum_ref):
    """Pass A: masked column sums of exp(-dist), accumulated over row tiles."""
    s = _tile_scores(src_ref, tgt_ref)                       # (tm, N_pad)
    part = jnp.sum(s * svalid_ref[...], axis=0, keepdims=True)  # (1, N_pad)

    @pl.when(pl.program_id(0) == 0)
    def _():
        colsum_ref[...] = part

    @pl.when(pl.program_id(0) > 0)
    def _():
        colsum_ref[...] = colsum_ref[...] + part


def _apply_kernel(src_ref, tgt_ref, svalid_ref, tvalid_ref, sw_ref, colfac_ref,
                  out_ref, *, dual_normalization):
    """Pass B: recompute scores, apply row/col factors, weights and mask."""
    s = _tile_scores(src_ref, tgt_ref)                       # (tm, N_pad)

    if dual_normalization:
        row_sum = jnp.sum(s * tvalid_ref[...], axis=1, keepdims=True)   # (tm,1)
        row_fac = sw_ref[...] * pl.reciprocal(
            jnp.maximum(row_sum, 1e-30), approx=True)                    # (tm,1)
        s = (s * s) * row_fac
    else:
        s = s * sw_ref[...]

    # Weights were pre-zeroed at invalid points, so masked entries are exactly
    # 0 here; the additive mask turns them into -1 (scores at valid entries
    # are strictly positive, so -1 never wins the top-k).
    valid = svalid_ref[...] * tvalid_ref[...]
    out_ref[...] = s * colfac_ref[...] + (valid - 1.0)


def _compute_scores(src_p, tgt_p, svalid_p, tvalid_p, sw_p, tw_p,
                    dual_normalization, tm):
    M_pad, C = src_p.shape
    N_pad, _ = tgt_p.shape
    num_m_tiles = M_pad // tm

    # Rough VMEM budget for the tile plan (double-buffered IO + temporaries).
    est = (4 * tm * N_pad * 4 + 2 * N_pad * C * 2 + 4 * tm * C * 2
           + 8 * N_pad * 4 + (2 << 20))
    vmem_limit = int(min(max(est, 32 * 1024 * 1024), 48 * 1024 * 1024))

    row_map = lambda i: (i, 0)
    full_map = lambda i: (0, 0)

    if dual_normalization:
        # Pass A: column sums (reduction over M -> "arbitrary" grid axis).
        colsum = pl.pallas_call(
            _colsum_kernel,
            out_shape=jax.ShapeDtypeStruct((1, N_pad), jnp.float32),
            grid_spec=pltpu.PrefetchScalarGridSpec(
                num_scalar_prefetch=0,
                grid=(num_m_tiles,),
                in_specs=[
                    pl.BlockSpec((tm, C), row_map),        # src bf16 tile
                    pl.BlockSpec((N_pad, C), full_map),    # tgt bf16 (resident)
                    pl.BlockSpec((tm, 1), row_map),        # src validity
                ],
                out_specs=pl.BlockSpec((1, N_pad), full_map),
            ),
            compiler_params=pltpu.CompilerParams(
                dimension_semantics=("arbitrary",),
                vmem_limit_bytes=vmem_limit,
            ),
        )(src_p, tgt_p, svalid_p)
        # Per-column factor: tgt weight / masked column sum (tiny, plain JAX).
        colfac = tw_p * (1.0 / jnp.maximum(colsum, 1e-30))
    else:
        colfac = tw_p

    # Pass B: independent row tiles -> "parallel" (shards over v7x megacore).
    scores = pl.pallas_call(
        functools.partial(_apply_kernel, dual_normalization=dual_normalization),
        out_shape=jax.ShapeDtypeStruct((M_pad, N_pad), jnp.float32),
        grid_spec=pltpu.PrefetchScalarGridSpec(
            num_scalar_prefetch=0,
            grid=(num_m_tiles,),
            in_specs=[
                pl.BlockSpec((tm, C), row_map),            # src bf16 tile
                pl.BlockSpec((N_pad, C), full_map),        # tgt bf16 (resident)
                pl.BlockSpec((tm, 1), row_map),            # src validity
                pl.BlockSpec((1, N_pad), full_map),        # tgt validity
                pl.BlockSpec((tm, 1), row_map),            # src weights (masked)
                pl.BlockSpec((1, N_pad), full_map),        # col factor
            ],
            out_specs=pl.BlockSpec((tm, N_pad), row_map),  # lane-dense output
        ),
        compiler_params=pltpu.CompilerParams(
            dimension_semantics=("parallel",),
            vmem_limit_bytes=vmem_limit,
        ),
    )(src_p, tgt_p, svalid_p, tvalid_p, sw_p, colfac)
    return scores


def superpoint_matching_global_topk(
    src_feats,
    tgt_feats,
    num_correspondences,
    src_masks=None,
    tgt_masks=None,
    src_weights=None,
    tgt_weights=None,
    dual_normalization=True,
    num_valid_src=None,      # optional STATIC count of True entries in src_masks
    num_valid_tgt=None,      # optional STATIC count of True entries in tgt_masks
    block_m=256,
):
    """JAX/Pallas equivalent of SuperPointMatchingGlobalTopk.forward.

    Returns (src_corr_indices, tgt_corr_indices, corr_scores) with indices in
    the ORIGINAL (un-compacted) coordinates, matching the PyTorch reference.
    """
    M, C = src_feats.shape
    N, C2 = tgt_feats.shape
    assert C == C2

    tm = min(_round_up(block_m, 8), _round_up(M, 8))
    M_pad = _round_up(M, tm)
    N_pad = _round_up(N, 128)

    svalid = jnp.ones((M,), jnp.float32) if src_masks is None else src_masks.astype(jnp.float32)
    tvalid = jnp.ones((N,), jnp.float32) if tgt_masks is None else tgt_masks.astype(jnp.float32)
    sw = jnp.ones((M,), jnp.float32) if src_weights is None else src_weights.astype(jnp.float32)
    tw = jnp.ones((N,), jnp.float32) if tgt_weights is None else tgt_weights.astype(jnp.float32)

    # Zero weights at invalid points so masked entries are exactly -1 after
    # the additive mask in the kernel (no compare/select over M*N).
    sw = sw * svalid
    tw = tw * tvalid

    def pad_rows(x, rows):
        return jnp.pad(x, ((0, rows - x.shape[0]),) + ((0, 0),) * (x.ndim - 1))

    src_p = pad_rows(src_feats.astype(jnp.bfloat16), M_pad)
    tgt_p = pad_rows(tgt_feats.astype(jnp.bfloat16), N_pad)
    svalid_p = pad_rows(svalid, M_pad).reshape(M_pad, 1)
    sw_p = pad_rows(sw, M_pad).reshape(M_pad, 1)
    tvalid_p = pad_rows(tvalid, N_pad).reshape(1, N_pad)
    tw_p = pad_rows(tw, N_pad).reshape(1, N_pad)

    scores = _compute_scores(src_p, tgt_p, svalid_p, tvalid_p, sw_p, tw_p,
                             dual_normalization, tm)        # (M_pad, N_pad)

    # Static k (no device->host sync). If masks are given, pass the valid
    # counts statically to reproduce the reference clamp; otherwise k is
    # clamped to M*N and, should the true valid population be smaller than k,
    # trailing entries carry the -1 sentinel score.
    n_src = M if (src_masks is None or num_valid_src is None) else int(num_valid_src)
    n_tgt = N if (tgt_masks is None or num_valid_tgt is None) else int(num_valid_tgt)
    k = min(int(num_correspondences), n_src * n_tgt)

    # Two-stage top-k: exact, with the final sort over M_pad*kk candidates.
    kk = min(k, N_pad)
    cand_vals, cand_cols = lax.top_k(scores, kk)             # (M_pad, kk)
    corr_scores, flat_idx = lax.top_k(cand_vals.reshape(-1), k)
    src_corr_indices = flat_idx // kk
    tgt_corr_indices = cand_cols.reshape(-1)[flat_idx]
    return src_corr_indices, tgt_corr_indices, corr_scores


def _reference_scores(src, tgt, smask, tmask, sw, tw, dual):
    """Pure-JAX reference (same semantics, bf16-rounded features)."""
    src = src.astype(jnp.bfloat16).astype(jnp.float32)
    tgt = tgt.astype(jnp.bfloat16).astype(jnp.float32)
    xy = src @ tgt.T
    s = jnp.exp(-jnp.maximum(2.0 - 2.0 * xy, 0.0))
    sv = (jnp.ones((src.shape[0],), jnp.float32) if smask is None
          else smask.astype(jnp.float32))[:, None]
    tv = (jnp.ones((tgt.shape[0],), jnp.float32) if tmask is None
          else tmask.astype(jnp.float32))[None, :]
    if dual:
        rs = jnp.sum(s * tv, axis=1, keepdims=True)
        cs = jnp.sum(s * sv, axis=0, keepdims=True)
        s = (s / rs) * (s / cs)
    if sw is not None:
        s = s * sw[:, None]
    if tw is not None:
        s = s * tw[None, :]
    return jnp.where(sv * tv > 0, s, -1.0)


if __name__ == "__main__":
    key = jax.random.PRNGKey(0)
    k0, k1, k2, k3 = jax.random.split(key, 4)

    M, N, C = 64, 48, 32
    num_corr = 16

    # L2-normalized features (pairwise_distance is used with normalized=True).
    src_feats = jax.random.normal(k0, (M, C), jnp.float32)
    tgt_feats = jax.random.normal(k1, (N, C), jnp.float32)
    src_feats = src_feats / jnp.linalg.norm(src_feats, axis=-1, keepdims=True)
    tgt_feats = tgt_feats / jnp.linalg.norm(tgt_feats, axis=-1, keepdims=True)

    src_masks = jnp.arange(M) < (M - 4)
    tgt_masks = jnp.arange(N) < (N - 6)
    src_weights = jax.random.uniform(k2, (M,), jnp.float32, 0.5, 1.5)
    tgt_weights = jax.random.uniform(k3, (N,), jnp.float32, 0.5, 1.5)

    # --- case 1: dual normalization, masks, weights ---
    src_idx, tgt_idx, corr = superpoint_matching_global_topk(
        src_feats, tgt_feats, num_corr,
        src_masks=src_masks, tgt_masks=tgt_masks,
        src_weights=src_weights, tgt_weights=tgt_weights,
        dual_normalization=True,
        num_valid_src=M - 4, num_valid_tgt=N - 6,
    )
    jax.block_until_ready((src_idx, tgt_idx, corr))

    ref = _reference_scores(src_feats, tgt_feats, src_masks, tgt_masks,
                            src_weights, tgt_weights, dual=True)
    ref_vals, _ = lax.top_k(ref.reshape(-1), num_corr)

    assert bool(jnp.all(corr[:-1] >= corr[1:]))
    assert bool(jnp.all(src_masks[src_idx])) and bool(jnp.all(tgt_masks[tgt_idx]))
    sel_ref = ref[src_idx, tgt_idx]
    assert jnp.allclose(corr, sel_ref, rtol=1e-2, atol=1e-5)
    assert jnp.allclose(corr, ref_vals, rtol=1e-2, atol=1e-5)

    # --- case 2: no dual normalization, no masks / weights ---
    s2_idx, t2_idx, corr2 = superpoint_matching_global_topk(
        src_feats, tgt_feats, num_corr, dual_normalization=False)
    jax.block_until_ready((s2_idx, t2_idx, corr2))

    ref2 = _reference_scores(src_feats, tgt_feats, None, None, None, None, dual=False)
    ref2_vals, _ = lax.top_k(ref2.reshape(-1), num_corr)
    assert bool(jnp.all(corr2[:-1] >= corr2[1:]))
    assert bool(jnp.all(s2_idx < M)) and bool(jnp.all(t2_idx < N))
    assert jnp.allclose(corr2, ref2_vals, rtol=1e-2, atol=1e-5)

    print("KERNEL_OK")
</pallas_src>

<mosaic_0001>
module attributes {stable_mosaic.version = 11 : i64} {
  func.func @_colsum_kernel(%arg0: i32, %arg1: memref<64x32xbf16, #tpu.memory_space<vmem>>, %arg2: memref<128x32xbf16, #tpu.memory_space<vmem>>, %arg3: memref<64x1xf32, #tpu.memory_space<vmem>>, %arg4: memref<1x128xf32, #tpu.memory_space<vmem>>) attributes {dimension_semantics = [#tpu.dimension_semantics<arbitrary>], iteration_bounds = array<i64: 1>, scalar_prefetch = 0 : i64, scratch_operands = 0 : i64, tpu.core_type = #tpu.core_type<tc>, window_params = [{transform_indices = @transform_0, window_bounds = array<i64: 64, 32>}, {pipeline_mode = #tpu.pipeline_mode<synchronous>, transform_indices = @transform_1, window_bounds = array<i64: 128, 32>}, {transform_indices = @transform_2, window_bounds = array<i64: 64, 1>}, {pipeline_mode = #tpu.pipeline_mode<synchronous>, transform_indices = @transform_3, window_bounds = array<i64: 1, 128>}]} {
    %c0 = arith.constant 0 : index
    %c0_0 = arith.constant 0 : index
    %0 = vector.load %arg1[%c0, %c0_0] : memref<64x32xbf16, #tpu.memory_space<vmem>>, vector<64x32xbf16>
    %c0_1 = arith.constant 0 : index
    %c0_2 = arith.constant 0 : index
    %1 = vector.load %arg2[%c0_1, %c0_2] : memref<128x32xbf16, #tpu.memory_space<vmem>>, vector<128x32xbf16>
    %cst = arith.constant dense<0.000000e+00> : vector<64x128xf32>
    %2 = tpu.matmul %0, %1, %cst {dimension_numbers = #tpu.dot_dimension_numbers<[1], [1], [0], [0], [0, 0, 1, 0], [], []>} : vector<64x32xbf16>, vector<128x32xbf16>, vector<64x128xf32> -> vector<64x128xf32>
    %cst_3 = arith.constant 2.000000e+00 : f32
    %3 = vector.broadcast %cst_3 : f32 to vector<64x128xf32>
    %4 = arith.mulf %3, %2 : vector<64x128xf32>
    %cst_4 = arith.constant 2.000000e+00 : f32
    %5 = vector.broadcast %cst_4 : f32 to vector<64x128xf32>
    %6 = arith.subf %5, %4 : vector<64x128xf32>
    %cst_5 = arith.constant 0.000000e+00 : f32
    %7 = vector.broadcast %cst_5 : f32 to vector<64x128xf32>
    %8 = arith.maximumf %6, %7 : vector<64x128xf32>
    %cst_6 = arith.constant 0.000000e+00 : f32
    %9 = vector.broadcast %cst_6 : f32 to vector<64x128xf32>
    %10 = arith.subf %9, %8 : vector<64x128xf32>
    %11 = math.exp %10 : vector<64x128xf32>
    %c0_7 = arith.constant 0 : index
    %c0_8 = arith.constant 0 : index
    %12 = vector.load %arg3[%c0_7, %c0_8] : memref<64x1xf32, #tpu.memory_space<vmem>>, vector<64x1xf32>
    %13 = vector.broadcast %12 : vector<64x1xf32> to vector<64x128xf32>
    %14 = arith.mulf %11, %13 : vector<64x128xf32>
    %cst_9 = arith.constant dense<0.000000e+00> : vector<128xf32>
    %15 = vector.multi_reduction <add>, %14, %cst_9 [0] : vector<64x128xf32> to vector<128xf32>
    %16 = vector.shape_cast %15 : vector<128xf32> to vector<1x128xf32>
    %c0_i32 = arith.constant 0 : i32
    %17 = arith.cmpi eq, %arg0, %c0_i32 : i32
    %18 = arith.extui %17 : i1 to i32
    %c0_i32_10 = arith.constant 0 : i32
    %19 = arith.cmpi ne, %18, %c0_i32_10 : i32
    scf.if %19 {
      %c0_13 = arith.constant 0 : index
      %c0_14 = arith.constant 0 : index
      %23 = vector.load %arg4[%c0_13, %c0_14] : memref<1x128xf32, #tpu.memory_space<vmem>>, vector<1x128xf32>
      tpu.vector_store %arg4[%c0_13, %c0_14], %16 {strides = array<i32>} : memref<1x128xf32, #tpu.memory_space<vmem>>, vector<1x128xf32>,
    } else {
    }
    %c0_i32_11 = arith.constant 0 : i32
    %20 = arith.cmpi sgt, %arg0, %c0_i32_11 : i32
    %21 = arith.extui %20 : i1 to i32
    %c0_i32_12 = arith.constant 0 : i32
    %22 = arith.cmpi ne, %21, %c0_i32_12 : i32
    scf.if %22 {
      %c0_13 = arith.constant 0 : index
      %c0_14 = arith.constant 0 : index
      %23 = vector.load %arg4[%c0_13, %c0_14] : memref<1x128xf32, #tpu.memory_space<vmem>>, vector<1x128xf32>
      %24 = arith.addf %23, %16 : vector<1x128xf32>
      %c0_15 = arith.constant 0 : index
      %c0_16 = arith.constant 0 : index
      %25 = vector.load %arg4[%c0_15, %c0_16] : memref<1x128xf32, #tpu.memory_space<vmem>>, vector<1x128xf32>
      tpu.vector_store %arg4[%c0_15, %c0_16], %24 {strides = array<i32>} : memref<1x128xf32, #tpu.memory_space<vmem>>, vector<1x128xf32>,
    } else {
    }
    return
  }
  func.func @transform_0(%arg0: i32) -> (i32, i32) {
    %c0_i32 = arith.constant 0 : i32
    %c0_i32_0 = arith.constant 0 : i32
    return %arg0, %c0_i32 : i32, i32
  }
  func.func @transform_1(%arg0: i32) -> (i32, i32) {
    %c0_i32 = arith.constant 0 : i32
    %c0_i32_0 = arith.constant 0 : i32
    %c0_i32_1 = arith.constant 0 : i32
    return %c0_i32, %c0_i32_0 : i32, i32
  }
  func.func @transform_2(%arg0: i32) -> (i32, i32) {
    %c0_i32 = arith.constant 0 : i32
    %c0_i32_0 = arith.constant 0 : i32
    return %arg0, %c0_i32 : i32, i32
  }
  func.func @transform_3(%arg0: i32) -> (i32, i32) {
    %c0_i32 = arith.constant 0 : i32
    %c0_i32_0 = arith.constant 0 : i32
    %c0_i32_1 = arith.constant 0 : i32
    return %c0_i32, %c0_i32_0 : i32, i32
  }
}

</mosaic_0001>

<llo_original>
// kernel: tpu_custom_call.1
$region0: #{tpu_custom_call.1}
  #allocation0 [shape = 'u32[]', space=smem, size = 0x4, offset = 0x4, fixed_abs, tag = 'smem constant byte address 0x4 - core index']
  #allocation1 [shape = 'u32[144,128]{1,0:T(1,128)}', space=vmem, size = 0x12000, scoped, tag = 'internal scratch']
  %s0 = inlined_call_operand.vmem [shape: bf16[64,32], index: 0, kind: input, shape index: {}]
  %s1 = inlined_call_operand.vmem [shape: bf16[128,32], index: 1, kind: input, shape index: {}]
  %s2 = inlined_call_operand.vmem [shape: f32[64,1], index: 2, kind: input, shape index: {}]
  %s3 = inlined_call_operand.hbm [shape: f32[1,128], index: 3, kind: output, shape index: {}]
  %s4 = sld [smem:[#allocation0]]
  $region30: #{tpu_custom_call.1} parent=0
    _
  %s6 = ssub.s32 1, %s4
  %s7 = scalar_select 0, %s6, %s4
  $region1: #{tpu_custom_call.1} parent=0
    #allocation2 [shape = 'u8[512]{0}', space=vmem, size = 0x400, scoped, tag = 'output window, operand 0, single buffered']
    #allocation3 [shape = 's32[1]{0}', space=sflag, size = 0x4, scoped, tag = 'scoped memory for tpu_custom_call.1']
    %8 = vsyncpa [#allocation3], 0
    // Predicated region
    $region2: #{tpu_custom_call.1} parent=1 // pred_check
      _
    $region3: #{tpu_custom_call.1} parent=1 // pred_check_branch
      %10 = sbr.rel (0) target = $region5
    $region4: #{tpu_custom_call.1} parent=1 // pred_region
      _
    $region5: #{tpu_custom_call.1} parent=1 // pred_fallthru
      _
    // Predicated region
    $region6: #{tpu_custom_call.1} parent=1 // pred_check
      _
    $region7: #{tpu_custom_call.1} parent=1 // pred_check_branch
      %12 = sbr.rel (0) target = $region9
    $region8: #{tpu_custom_call.1} parent=1 // pred_region
      _
    $region9: #{tpu_custom_call.1} parent=1 // pred_fallthru
      _
    // Predicated region
    $region10: #{tpu_custom_call.1} parent=1 // pred_check
      _
    $region11: #{tpu_custom_call.1} parent=1 // pred_check_branch
      %14 = sbr.rel (0) target = $region13
    $region12: #{tpu_custom_call.1} parent=1 // pred_region
      _
    $region13: #{tpu_custom_call.1} parent=1 // pred_fallthru
      _
    %v16 = vld [vmem:[%s0] sm:$0xf]
    %v17 = vld [vmem:[%s0 + $0x4] sm:$0xf]
    %v18 = vld [vmem:[%s0 + $0x8] sm:$0xf]
    %v19 = vld [vmem:[%s0 + $0xc] sm:$0xf]
    %v20 = vld [vmem:[%s0 + $0x10] sm:$0xf]
    %v21 = vld [vmem:[%s0 + $0x14] sm:$0xf]
    %v22 = vld [vmem:[%s0 + $0x18] sm:$0xf]
    %v23 = vld [vmem:[%s0 + $0x1c] sm:$0xf]
    %v24 = vld [vmem:[%s1] sm:$0xf]
    %v25 = vld [vmem:[%s1 + $0x4] sm:$0xf]
    %v26 = vld [vmem:[%s1 + $0x8] sm:$0xf]
    %v27 = vld [vmem:[%s1 + $0xc] sm:$0xf]
    %v28 = vld [vmem:[%s1 + $0x10] sm:$0xf]
    %v29 = vld [vmem:[%s1 + $0x14] sm:$0xf]
    %v30 = vld [vmem:[%s1 + $0x18] sm:$0xf]
    %v31 = vld [vmem:[%s1 + $0x1c] sm:$0xf]
    %v32 = vld [vmem:[%s1 + $0x20] sm:$0xf]
    %v33 = vld [vmem:[%s1 + $0x24] sm:$0xf]
    %v34 = vld [vmem:[%s1 + $0x28] sm:$0xf]
    %v35 = vld [vmem:[%s1 + $0x2c] sm:$0xf]
    %v36 = vld [vmem:[%s1 + $0x30] sm:$0xf]
    %v37 = vld [vmem:[%s1 + $0x34] sm:$0xf]
    %v38 = vld [vmem:[%s1 + $0x38] sm:$0xf]
    %v39 = vld [vmem:[%s1 + $0x3c] sm:$0xf]
    %v48 = vunpack.c.l.b16 %v16
    %v49 = vunpack.c.l.b16 %v17
    %v50 = vunpack.c.l.b16 %v18
    %v51 = vunpack.c.l.b16 %v19
    %v52 = vunpack.c.l.b16 %v20
    %v53 = vunpack.c.l.b16 %v21
    %v54 = vunpack.c.l.b16 %v22
    %v55 = vunpack.c.l.b16 %v23
    %v56 = vpack.c.b16 %v49, %v48
    %v57 = vpack.c.b16 %v51, %v50
    %v58 = vpack.c.b16 %v53, %v52
    %v59 = vpack.c.b16 %v55, %v54
    %v76 = vunpack.c.l.b16 %v24
    %v77 = vunpack.c.l.b16 %v25
    %v78 = vunpack.c.l.b16 %v26
    %v79 = vunpack.c.l.b16 %v27
    %v80 = vunpack.c.l.b16 %v28
    %v81 = vunpack.c.l.b16 %v29
    %v82 = vunpack.c.l.b16 %v30
    %v83 = vunpack.c.l.b16 %v31
    %v84 = vunpack.c.l.b16 %v32
    %v85 = vunpack.c.l.b16 %v33
    %v86 = vunpack.c.l.b16 %v34
    %v87 = vunpack.c.l.b16 %v35
    %v88 = vunpack.c.l.b16 %v36
    %v89 = vunpack.c.l.b16 %v37
    %v90 = vunpack.c.l.b16 %v38
    %v91 = vunpack.c.l.b16 %v39
    %v92 = vpack.c.b16 %v77, %v76
    %v93 = vpack.c.b16 %v79, %v78
    %v94 = vpack.c.b16 %v81, %v80
    %v95 = vpack.c.b16 %v83, %v82
    %v96 = vpack.c.b16 %v85, %v84
    %v97 = vpack.c.b16 %v87, %v86
    %v98 = vpack.c.b16 %v89, %v88
    %v99 = vpack.c.b16 %v91, %v90
    %vm100 = vcmask 261120
    %v102 = vsel %vm100, %v56, 0
    %v105 = vsel %vm100, %v57, 0
    %v108 = vsel %vm100, %v58, 0
    %v111 = vsel %vm100, %v59, 0
    %v114 = vsel %vm100, %v92, 0
    %v117 = vsel %vm100, %v93, 0
    %v120 = vsel %vm100, %v94, 0
    %v123 = vsel %vm100, %v95, 0
    %v126 = vsel %vm100, %v96, 0
    %v129 = vsel %vm100, %v97, 0
    %v132 = vsel %vm100, %v98, 0
    %v135 = vsel %vm100, %v99, 0
    %137 = vmatprep.subr.bf16.mxu0 0
    %138 = vmatpush1.bf16.xpose.msra.mxu0 %v114
    %139 = vmatprep.subr.bf16.mxu0 0
    %140 = vmatpush1.bf16.xpose.msra.mxu0 %v117
    %141 = vmatprep.subr.bf16.mxu0 0
    %142 = vmatpush1.bf16.xpose.msra.mxu0 %v120
    %143 = vmatprep.subr.bf16.mxu0 0
    %144 = vmatpush1.bf16.xpose.msra.mxu0 %v123
    %145 = vmatprep.subr.bf16.mxu0 0
    %146 = vmatpush1.bf16.xpose.msra.mxu0 %v126
    %147 = vmatprep.subr.bf16.mxu0 0
    %148 = vmatpush1.bf16.xpose.msra.mxu0 %v129
    %149 = vmatprep.subr.bf16.mxu0 0
    %150 = vmatpush1.bf16.xpose.msra.mxu0 %v132
    %151 = vmatprep.subr.bf16.mxu0 0
    %152 = vmatpush1.bf16.xpose.msra.mxu0 %v135
    %153 = vmatprep.subr.bf16.mxu0 0
    %154 = vmatpush1.bf16.xpose.msra.mxu0 0
    %155 = vmatprep.subr.bf16.mxu0 0
    %156 = vmatpush1.bf16.xpose.msra.mxu0 0
    %157 = vmatprep.subr.bf16.mxu0 0
    %158 = vmatpush1.bf16.xpose.msra.mxu0 0
    %159 = vmatprep.subr.bf16.mxu0 0
    %160 = vmatpush1.bf16.xpose.msra.mxu0 0
    %161 = vmatprep.subr.bf16.mxu0 0
    %162 = vmatpush1.bf16.xpose.msra.mxu0 0
    %163 = vmatprep.subr.bf16.mxu0 0
    %164 = vmatpush1.bf16.xpose.msra.mxu0 0
    %165 = vmatprep.subr.bf16.mxu0 0
    %166 = vmatpush1.bf16.xpose.msra.mxu0 0
    %167 = vmatprep.subr.bf16.mxu0 0
    %168 = vmatpush1.bf16.xpose.msra.mxu0 0
    %169 = vmatprep.mubr.bf16.mxu0 0
    %170 = vmatmul.mubr.bf16.gmra.mrb[0].mxu0 %v102
    %v171 = vpop.f32.mrb[0].mxu0
    %v172 = vadd.f32 0.0, %v171
    %v173 = vpop.f32.mrb[0].mxu0
    %v174 = vpop.f32.mrb[0].mxu0
    %v175 = vadd.f32 0.0, %v174
    %v176 = vpop.f32.mrb[0].mxu0
    %177 = vmatprep.mubr.bf16.mxu0 0
    %178 = vmatmul.mubr.bf16.gmra.mrb[0].mxu0 %v105
    %v179 = vpop.f32.mrb[0].mxu0
    %v180 = vadd.f32 0.0, %v179
    %v181 = vpop.f32.mrb[0].mxu0
    %v182 = vpop.f32.mrb[0].mxu0
    %v183 = vadd.f32 0.0, %v182
    %v184 = vpop.f32.mrb[0].mxu0
    %185 = vmatprep.mubr.bf16.mxu0 0
    %186 = vmatmul.mubr.bf16.gmra.mrb[0].mxu0 %v108
    %v187 = vpop.f32.mrb[0].mxu0
    %v188 = vadd.f32 0.0, %v187
    %v189 = vpop.f32.mrb[0].mxu0
    %v190 = vpop.f32.mrb[0].mxu0
    %v191 = vadd.f32 0.0, %v190
    %v192 = vpop.f32.mrb[0].mxu0
    %193 = vmatprep.mubr.bf16.mxu0 0
    %194 = vmatmul.mubr.bf16.gmra.mrb[0].mxu0 %v111
    %v195 = vpop.f32.mrb[0].mxu0
    %v196 = vadd.f32 0.0, %v195
    %v197 = vpop.f32.mrb[0].mxu0
    %v198 = vpop.f32.mrb[0].mxu0
    %v199 = vadd.f32 0.0, %v198
    %v200 = vpop.f32.mrb[0].mxu0
    %201 = vdwg.mxu0
    %v202 = vmul.f32 %v172, 2.0
    %v203 = vmul.f32 %v175, 2.0
    %v204 = vmul.f32 %v180, 2.0
    %v205 = vmul.f32 %v183, 2.0
    %v206 = vmul.f32 %v188, 2.0
    %v207 = vmul.f32 %v191, 2.0
    %v208 = vmul.f32 %v196, 2.0
    %v209 = vmul.f32 %v199, 2.0
    %v210 = vsub.f32 2.0, %v202
    %v211 = vsub.f32 2.0, %v203
    %v212 = vsub.f32 2.0, %v204
    %v213 = vsub.f32 2.0, %v205
    %v214 = vsub.f32 2.0, %v206
    %v215 = vsub.f32 2.0, %v207
    %v216 = vsub.f32 2.0, %v208
    %v217 = vsub.f32 2.0, %v209
    %v218 = vmax.f32 %v210, 0.0
    %v219 = vmax.f32 %v211, 0.0
    %v220 = vmax.f32 %v212, 0.0
    %v221 = vmax.f32 %v213, 0.0
    %v222 = vmax.f32 %v214, 0.0
    %v223 = vmax.f32 %v215, 0.0
    %v224 = vmax.f32 %v216, 0.0
    %v225 = vmax.f32 %v217, 0.0
    %v226 = vsub.f32 0.0, %v218
    %v227 = vsub.f32 0.0, %v219
    %v228 = vsub.f32 0.0, %v220
    %v229 = vsub.f32 0.0, %v221
    %v230 = vsub.f32 0.0, %v222
    %v231 = vsub.f32 0.0, %v223
    %v232 = vsub.f32 0.0, %v224
    %v233 = vsub.f32 0.0, %v225
    %v234 = vmul.f32 %v226, 1.442695
    %v235 = vpow.pop %v234
    %v236 = vmul.f32 %v227, 1.442695
    %v237 = vpow.pop %v236
    %v238 = vmul.f32 %v228, 1.442695
    %v239 = vpow.pop %v238
    %v240 = vmul.f32 %v229, 1.442695
    %v241 = vpow.pop %v240
    %v242 = vmul.f32 %v230, 1.442695
    %v243 = vpow.pop %v242
    %v244 = vmul.f32 %v231, 1.442695
    %v245 = vpow.pop %v244
    %v246 = vmul.f32 %v232, 1.442695
    %v247 = vpow.pop %v246
    %v248 = vmul.f32 %v233, 1.442695
    %v249 = vpow.pop %v248
    %v250 = vld [vmem:[%s2] sm:$0xff]
    %v251 = vld [vmem:[%s2 + $0x8] sm:$0xff]
    %v252 = vld [vmem:[%s2 + $0x10] sm:$0xff]
    %v253 = vld [vmem:[%s2 + $0x18] sm:$0xff]
    %v254 = vld [vmem:[%s2 + $0x20] sm:$0xff]
    %v255 = vld [vmem:[%s2 + $0x28] sm:$0xff]
    %v256 = vld [vmem:[%s2 + $0x30] sm:$0xff]
    %v257 = vld [vmem:[%s2 + $0x38] sm:$0xff]
    %259 = vset.pattern.permute.xlu0 0
    %260 = vperm.xlu0 %259, %v250
    %v261 = vpop.permute.xlu0 %260
    %264 = vset.pattern.permute.xlu0 0
    %265 = vperm.xlu0 %264, %v251
    %v266 = vpop.permute.xlu0 %265
    %269 = vset.pattern.permute.xlu0 0
    %270 = vperm.xlu0 %269, %v252
    %v271 = vpop.permute.xlu0 %270
    %274 = vset.pattern.permute.xlu0 0
    %275 = vperm.xlu0 %274, %v253
    %v276 = vpop.permute.xlu0 %275
    %279 = vset.pattern.permute.xlu0 0
    %280 = vperm.xlu0 %279, %v254
    %v281 = vpop.permute.xlu0 %280
    %284 = vset.pattern.permute.xlu0 0
    %285 = vperm.xlu0 %284, %v255
    %v286 = vpop.permute.xlu0 %285
    %289 = vset.pattern.permute.xlu0 0
    %290 = vperm.xlu0 %289, %v256
    %v291 = vpop.permute.xlu0 %290
    %294 = vset.pattern.permute.xlu0 0
    %295 = vperm.xlu0 %294, %v257
    %v296 = vpop.permute.xlu0 %295
    %v298 = vmul.f32 %v235, %v261
    %v299 = vmul.f32 %v237, %v266
    %v300 = vmul.f32 %v239, %v271
    %v301 = vmul.f32 %v241, %v276
    %v302 = vmul.f32 %v243, %v281
    %v303 = vmul.f32 %v245, %v286
    %v304 = vmul.f32 %v247, %v291
    %v305 = vmul.f32 %v249, %v296
    %v306 = vadd.f32 %v298, %v299
    %v307 = vadd.f32 %v306, %v300
    %v308 = vadd.f32 %v307, %v301
    %v309 = vadd.f32 %v308, %v302
    %v310 = vadd.f32 %v309, %v303
    %v311 = vadd.f32 %v310, %v304
    %v312 = vadd.f32 %v311, %v305
    %v313 = vrot.slane %v312, 4
    %v314 = vadd.f32 %v312, %v313
    %v315 = vrot.slane %v314, 2
    %v316 = vadd.f32 %v314, %v315
    %v317 = vrot.slane %v316, 1
    %v318 = vadd.f32 %v316, %v317
    %p319 = scmp.eq.s32.totalorder 0, 0
    // Predicated region
    $region14: #{tpu_custom_call.1} parent=1 // pred_check
      %p320 = pneg %p319
    $region15: #{tpu_custom_call.1} parent=1 // pred_check_branch
      %322 = sbr.rel (%p320) target = $region17
    $region16: #{tpu_custom_call.1} parent=1 // pred_region
      %323 = vst [vmem:[#allocation2] sm:$0x1] %v318
    $region17: #{tpu_custom_call.1} parent=1 // pred_fallthru
      _
    %p324 = scmp.gt.s32.totalorder 0, 0
    // Predicated region
    $region18: #{tpu_custom_call.1} parent=1 // pred_check
      %p325 = pneg %p324
    $region19: #{tpu_custom_call.1} parent=1 // pred_check_branch
      %327 = sbr.rel (%p325) target = $region21
    $region20: #{tpu_custom_call.1} parent=1 // pred_region
      %v328 = vld [vmem:[#allocation2] sm:$0x1]
      %v329 = vadd.f32 %v328, %v318
      %330 = vst [vmem:[#allocation2] sm:$0x1] %v329
    $region21: #{tpu_custom_call.1} parent=1 // pred_fallthru
      _
    // Predicated region
    $region22: #{tpu_custom_call.1} parent=1 // pred_check
      _
    $region23: #{tpu_custom_call.1} parent=1 // pred_check_branch
      %332 = sbr.rel (0) target = $region25
    $region24: #{tpu_custom_call.1} parent=1 // pred_region
      %s334 = ssub.s32 16, 16
      %335 = vsyncadd [#allocation3], %s334
      %s337 = sshll.u32 [#allocation2], 4
      %s338 = int_to_ptr.vmem [resolvable:$true] %s337
      %340 = dma.vmem_to_hbm [thread:$0]  %s338, 16, %s3, [#allocation3]
    $region25: #{tpu_custom_call.1} parent=1 // pred_fallthru
      _
    // Predicated region
    $region26: #{tpu_custom_call.1} parent=1 // pred_check
      _
    $region27: #{tpu_custom_call.1} parent=1 // pred_check_branch
      %342 = sbr.rel (0) target = $region29
    $region28: #{tpu_custom_call.1} parent=1 // pred_region
      %343 = dma.done [#allocation3], 16
    $region29: #{tpu_custom_call.1} parent=1 // pred_fallthru
      _
    %344 = vsyncpa [#allocation3], 1

</llo_original>
